<compile_context>
chip_gen: v6e
topology: v6e:2x2x1
jax: 0.10.0
libtpu: 0.0.40
codegen_flags: <defaults>
</compile_context>

<pallas_src>
import functools

import jax
import jax.numpy as jnp
from jax.experimental import pallas as pl
from jax.experimental.pallas import tpu as pltpu


# ----------------------------------------------------------------------------
# Tile configuration (per TPU generation)
# ----------------------------------------------------------------------------
def _round_up(v, m):
    return ((v + m - 1) // m) * m


def _tpu_tile_config():
    """(tm, tn, tk, vmem_limit_bytes) per TPU generation."""
    kind = ""
    try:
        kind = jax.devices()[0].device_kind.lower()
    except Exception:
        pass
    if "v6" in kind:
        # v6e: 128 MiB physical VMEM; needs the highest intensity (~640 f/B).
        return 1024, 1024, 512, 96 * 1024 * 1024
    if "v5" in kind:
        # v5e: ~240 f/B break-even; single vector-store slot -> moderate tile.
        return 512, 512, 512, 64 * 1024 * 1024
    # v7x (and conservative default): 64 MiB VMEM/TC -> keep buffers < ~48 MiB.
    return 512, 1024, 512, 48 * 1024 * 1024


_TM, _TN, _TK, _VMEM_LIMIT = _tpu_tile_config()
# If padded K is at most this, use a single reduction block (tk = K) so the
# stationary operand panel really stays VMEM-resident across the outer axis.
_TK_RESIDENT_MAX = 4096


def _pick_lane_tile(n, target):
    """Largest multiple of 128 <= target that divides round_up(n, 128)."""
    n_pad = _round_up(n, 128)
    t = min(target, n_pad)
    t -= t % 128
    while n_pad % t != 0:
        t -= 128
    return t, n_pad


def _pick_k_tile(k, target):
    k_pad = _round_up(k, 128)
    if k_pad <= _TK_RESIDENT_MAX:
        return k_pad, k_pad          # single k block -> panel residency is real
    tk = min(target, k_pad)
    tk -= tk % 128
    return tk, _round_up(k, tk)


# ----------------------------------------------------------------------------
# Pallas kernel: one (tm, tn) output tile of  o = x @ W + b
# ----------------------------------------------------------------------------
def _linear_kernel(x_ref, w_ref, b_ref, o_ref):
    # Reduction axis k is the innermost grid axis and the output block index
    # ignores k, so o_ref stays VMEM-resident across the reduction and doubles
    # as the f32 accumulator (no scratch, no extra epilogue copy pass).
    k = pl.program_id(2)
    prod = jnp.dot(x_ref[...], w_ref[...], preferred_element_type=jnp.float32)

    @pl.when(k == 0)
    def _init():
        o_ref[...] = prod

    @pl.when(k > 0)
    def _accumulate():
        o_ref[...] += prod

    @pl.when(k == pl.num_programs(2) - 1)
    def _bias():
        o_ref[...] += b_ref[...]


def _pallas_linear_impl(xb, wb, bf, *, tm, tn, tk):
    """Tiled matmul on already-padded, MXU-aligned bf16 operands (f32 out)."""
    Mp, Kp = xb.shape
    _, Np = wb.shape
    gm, gn, gk = Mp // tm, Np // tn, Kp // tk

    # Megacore: lead with the parallel axis that has more blocks so both
    # TensorCores get balanced work; reduction axis stays innermost.
    lead_i = gm >= gn
    if lead_i:
        grid = (gm, gn, gk)
        x_map = lambda i, j, k: (i, k)
        w_map = lambda i, j, k: (k, j)
        b_map = lambda i, j, k: (0, j)
        o_map = lambda i, j, k: (i, j)
        x_reads = 1 if gk == 1 else gn      # x resident across j when gk == 1
        w_reads = gm
    else:
        grid = (gn, gm, gk)
        x_map = lambda j, i, k: (i, k)
        w_map = lambda j, i, k: (k, j)
        b_map = lambda j, i, k: (0, j)
        o_map = lambda j, i, k: (i, j)
        x_reads = gn
        w_reads = 1 if gk == 1 else gm      # W resident across i when gk == 1

    flops = 2 * Mp * Np * Kp
    bytes_accessed = (
        x_reads * Mp * Kp * 2       # bf16 x, re-read per outer step if needed
        + w_reads * Kp * Np * 2     # bf16 W
        + Mp * Np * 4               # f32 output writeback
        + Np * 4                    # f32 bias
    )

    return pl.pallas_call(
        _linear_kernel,
        out_shape=jax.ShapeDtypeStruct((Mp, Np), jnp.float32),
        grid_spec=pltpu.PrefetchScalarGridSpec(
            num_scalar_prefetch=0,
            grid=grid,
            in_specs=[
                pl.BlockSpec((tm, tk), x_map),
                pl.BlockSpec((tk, tn), w_map),
                pl.BlockSpec((1, tn), b_map),
            ],
            out_specs=pl.BlockSpec((tm, tn), o_map),
        ),
        compiler_params=pltpu.CompilerParams(
            dimension_semantics=("parallel", "parallel", "arbitrary"),
            vmem_limit_bytes=_VMEM_LIMIT,
        ),
        cost_estimate=pl.CostEstimate(
            flops=flops, transcendentals=0, bytes_accessed=bytes_accessed
        ),
    )(xb, wb, bf)


@functools.partial(jax.jit, static_argnames=("tn", "tk", "n_out"))
def _pallas_linear(x2d, w_padded, b_padded, *, tn, tk, n_out):
    """x2d: (M, K) f32, w_padded: (Kp, Np) bf16, b_padded: (1, Np) f32."""
    M, K = x2d.shape
    Kp, Np = w_padded.shape

    tm = min(_TM, _round_up(M, 8))
    Mp = _round_up(M, tm)

    xb = x2d.astype(jnp.bfloat16)
    if Mp != M or Kp != K:
        xb = jnp.pad(xb, ((0, Mp - M), (0, Kp - K)))

    out = _pallas_linear_impl(xb, w_padded, b_padded, tm=tm, tn=tn, tk=tk)
    if Mp != M or Np != n_out:
        out = out[:M, :n_out]
    return out


# ----------------------------------------------------------------------------
# Inner layer: concrete default network the framework dispatches to.
# ----------------------------------------------------------------------------
class DenseLayer:
    def __init__(self, hidden_in, hidden_out, key):
        kw, kb = jax.random.split(key)
        # Deterministic synthetic init (no checkpoint load).
        self.w = (
            jax.random.normal(kw, (hidden_in, hidden_out), jnp.float32)
            * (1.0 / jnp.sqrt(hidden_in))
        )
        self.b = jax.random.normal(kb, (hidden_out,), jnp.float32) * 0.01
        self.n_out = hidden_out

        # Tile config depends only on (K, N): freeze it and pre-cast/pre-pad
        # the static weight & bias once, hoisted out of the per-call jit path.
        self.tn, Np = _pick_lane_tile(hidden_out, _TN)
        self.tk, Kp = _pick_k_tile(hidden_in, _TK)

        wb = self.w.astype(jnp.bfloat16)
        if Kp != hidden_in or Np != hidden_out:
            wb = jnp.pad(wb, ((0, Kp - hidden_in), (0, Np - hidden_out)))
        self.w_padded = wb

        bf = self.b.astype(jnp.float32)
        if Np != hidden_out:
            bf = jnp.pad(bf, (0, Np - hidden_out))
        self.b_padded = bf.reshape(1, Np)

        self._lvt = None

    def setLVT(self, LVT):
        self._lvt = LVT
        return self._lvt

    def __call__(self, x):
        # x: (batch, seq, hidden_in) -> (batch, seq, hidden_out)
        B, S, H = x.shape
        y2d = _pallas_linear(
            x.reshape(B * S, H),
            self.w_padded,
            self.b_padded,
            tn=self.tn,
            tk=self.tk,
            n_out=self.n_out,
        )
        return y2d.reshape(B, S, self.n_out)

    def getLoss(self, x, target):
        y = self(x)
        return jnp.mean((y - target) ** 2)

    def getProb(self, x):
        return jax.nn.softmax(self(x), axis=-1)


# ----------------------------------------------------------------------------
# framework: faithful translation of the PyTorch dispatcher.
# ----------------------------------------------------------------------------
class Framework:
    """I am just a trigger."""

    def __init__(self, options, log=None, emb_tok_init=None):
        # TODO(synk): original code does eval(options['network']['type']) on a
        # config-provided class name; this registry stands in for it.
        registry = {"DenseLayer": DenseLayer}
        net_type = options["network"]["type"]
        self.layer = registry[net_type](
            options["network"]["hidden_in"],
            options["network"]["hidden_out"],
            options["network"]["key"],
        )

    def setLVT(self, LVT):
        return self.layer.setLVT(LVT)

    def forward(self, *argv, **kwargs):
        return self.layer(*argv, **kwargs)

    __call__ = forward

    def getLoss(self, *argv, **kwargs):
        return self.layer.getLoss(*argv, **kwargs)

    def genSummary(self, *argv, **kwargs):
        # TODO(synk): summary generation depends on the unknown inner network.
        raise NotImplementedError

    def getProb(self, *argv, **kwargs):
        return self.layer.getProb(*argv, **kwargs)

    def debug(self, *argv, **kwargs):
        return self.layer(*argv, **kwargs)


if __name__ == "__main__":
    key = jax.random.PRNGKey(0)
    k_x, k_p = jax.random.split(key)

    batch, seq, hidden = 2, 8, 32
    x = jax.random.normal(k_x, (batch, seq, hidden), jnp.float32)

    options = {
        "network": {
            "type": "DenseLayer",
            "hidden_in": hidden,
            "hidden_out": hidden,
            "key": k_p,
        }
    }
    model = Framework(options, log=None)

    y = model(x)
    jax.block_until_ready(y)

    # Correctness check: the kernel feeds bf16 operands to the MXU with f32
    # accumulation, so compare against a high-precision reference on the same
    # bf16-rounded operands.
    xb = x.reshape(-1, hidden).astype(jnp.bfloat16).astype(jnp.float32)
    wb = model.layer.w.astype(jnp.bfloat16).astype(jnp.float32)
    ref = (
        jnp.dot(xb, wb, precision=jax.lax.Precision.HIGHEST) + model.layer.b
    ).reshape(batch, seq, hidden)

    assert y.shape == (batch, seq, hidden)
    assert y.dtype == jnp.float32
    assert jnp.allclose(y, ref, atol=1e-3, rtol=1e-3)

    print("KERNEL_OK")
</pallas_src>

<mosaic_0001>
module attributes {stable_mosaic.version = 11 : i64} {
  func.func @_linear_kernel(%arg0: i32, %arg1: i32, %arg2: i32, %arg3: memref<16x128xbf16, #tpu.memory_space<vmem>>, %arg4: memref<128x128xbf16, #tpu.memory_space<vmem>>, %arg5: memref<1x128xf32, #tpu.memory_space<vmem>>, %arg6: memref<16x128xf32, #tpu.memory_space<vmem>>) attributes {dimension_semantics = [#tpu.dimension_semantics<parallel>, #tpu.dimension_semantics<parallel>, #tpu.dimension_semantics<arbitrary>], iteration_bounds = array<i64: 1, 1, 1>, scalar_prefetch = 0 : i64, scratch_operands = 0 : i64, tpu.core_type = #tpu.core_type<tc>, window_params = [{transform_indices = @transform_0, window_bounds = array<i64: 16, 128>}, {transform_indices = @transform_1, window_bounds = array<i64: 128, 128>}, {transform_indices = @transform_2, window_bounds = array<i64: 1, 128>}, {transform_indices = @transform_3, window_bounds = array<i64: 16, 128>}]} {
    %c0 = arith.constant 0 : index
    %c0_0 = arith.constant 0 : index
    %0 = vector.load %arg3[%c0, %c0_0] : memref<16x128xbf16, #tpu.memory_space<vmem>>, vector<16x128xbf16>
    %c0_1 = arith.constant 0 : index
    %c0_2 = arith.constant 0 : index
    %1 = vector.load %arg4[%c0_1, %c0_2] : memref<128x128xbf16, #tpu.memory_space<vmem>>, vector<128x128xbf16>
    %cst = arith.constant dense<0.000000e+00> : vector<16x128xf32>
    %2 = tpu.matmul %0, %1, %cst {dimension_numbers = #tpu.dot_dimension_numbers<[1], [0], [0], [1], [0, 0, 1, 1], [], []>} : vector<16x128xbf16>, vector<128x128xbf16>, vector<16x128xf32> -> vector<16x128xf32>
    %c0_i32 = arith.constant 0 : i32
    %3 = arith.cmpi eq, %arg2, %c0_i32 : i32
    %4 = arith.extui %3 : i1 to i32
    %c0_i32_3 = arith.constant 0 : i32
    %5 = arith.cmpi ne, %4, %c0_i32_3 : i32
    scf.if %5 {
      %c0_8 = arith.constant 0 : index
      %c0_9 = arith.constant 0 : index
      %12 = vector.load %arg6[%c0_8, %c0_9] : memref<16x128xf32, #tpu.memory_space<vmem>>, vector<16x128xf32>
      tpu.vector_store %arg6[%c0_8, %c0_9], %2 {strides = array<i32>} : memref<16x128xf32, #tpu.memory_space<vmem>>, vector<16x128xf32>,
    } else {
    }
    %c0_i32_4 = arith.constant 0 : i32
    %6 = arith.cmpi sgt, %arg2, %c0_i32_4 : i32
    %7 = arith.extui %6 : i1 to i32
    %c0_i32_5 = arith.constant 0 : i32
    %8 = arith.cmpi ne, %7, %c0_i32_5 : i32
    scf.if %8 {
      %c0_8 = arith.constant 0 : index
      %c0_9 = arith.constant 0 : index
      %12 = vector.load %arg6[%c0_8, %c0_9] : memref<16x128xf32, #tpu.memory_space<vmem>>, vector<16x128xf32>
      %13 = arith.addf %12, %2 : vector<16x128xf32>
      %c0_10 = arith.constant 0 : index
      %c0_11 = arith.constant 0 : index
      %14 = vector.load %arg6[%c0_10, %c0_11] : memref<16x128xf32, #tpu.memory_space<vmem>>, vector<16x128xf32>
      tpu.vector_store %arg6[%c0_10, %c0_11], %13 {strides = array<i32>} : memref<16x128xf32, #tpu.memory_space<vmem>>, vector<16x128xf32>,
    } else {
    }
    %c0_i32_6 = arith.constant 0 : i32
    %9 = arith.cmpi eq, %arg2, %c0_i32_6 : i32
    %10 = arith.extui %9 : i1 to i32
    %c0_i32_7 = arith.constant 0 : i32
    %11 = arith.cmpi ne, %10, %c0_i32_7 : i32
    scf.if %11 {
      %c0_8 = arith.constant 0 : index
      %c0_9 = arith.constant 0 : index
      %12 = vector.load %arg6[%c0_8, %c0_9] : memref<16x128xf32, #tpu.memory_space<vmem>>, vector<16x128xf32>
      %c0_10 = arith.constant 0 : index
      %c0_11 = arith.constant 0 : index
      %13 = vector.load %arg5[%c0_10, %c0_11] : memref<1x128xf32, #tpu.memory_space<vmem>>, vector<1x128xf32>
      %14 = vector.broadcast %13 : vector<1x128xf32> to vector<16x128xf32>
      %15 = arith.addf %12, %14 : vector<16x128xf32>
      %c0_12 = arith.constant 0 : index
      %c0_13 = arith.constant 0 : index
      %16 = vector.load %arg6[%c0_12, %c0_13] : memref<16x128xf32, #tpu.memory_space<vmem>>, vector<16x128xf32>
      tpu.vector_store %arg6[%c0_12, %c0_13], %15 {strides = array<i32>} : memref<16x128xf32, #tpu.memory_space<vmem>>, vector<16x128xf32>,
    } else {
    }
    return
  }
  func.func @transform_0(%arg0: i32, %arg1: i32, %arg2: i32) -> (i32, i32) {
    %c0_i32 = arith.constant 0 : i32
    return %arg0, %arg2 : i32, i32
  }
  func.func @transform_1(%arg0: i32, %arg1: i32, %arg2: i32) -> (i32, i32) {
    %c0_i32 = arith.constant 0 : i32
    return %arg2, %arg1 : i32, i32
  }
  func.func @transform_2(%arg0: i32, %arg1: i32, %arg2: i32) -> (i32, i32) {
    %c0_i32 = arith.constant 0 : i32
    %c0_i32_0 = arith.constant 0 : i32
    return %c0_i32, %arg1 : i32, i32
  }
  func.func @transform_3(%arg0: i32, %arg1: i32, %arg2: i32) -> (i32, i32) {
    %c0_i32 = arith.constant 0 : i32
    return %arg0, %arg1 : i32, i32
  }
}

</mosaic_0001>

<llo_original>
// kernel: _pallas_linear.1
$region0: #{_pallas_linear.1}
  #allocation0 [shape = 'u32[]', space=smem, size = 0x4, offset = 0x4, fixed_abs, tag = 'smem constant byte address 0x4 - core index']
  #allocation1 [shape = 'u32[144,128]{1,0:T(1,128)}', space=vmem, size = 0x12000, scoped, tag = 'internal scratch']
  %s0 = inlined_call_operand.vmem [shape: bf16[16,128], index: 0, kind: input, shape index: {}]
  %s1 = inlined_call_operand.hbm [shape: bf16[128,128], index: 1, kind: input, shape index: {}]
  %s2 = inlined_call_operand.vmem [shape: f32[1,128], index: 2, kind: input, shape index: {}]
  %s3 = inlined_call_operand.hbm [shape: f32[16,128], index: 3, kind: output, shape index: {}]
  %s4 = sld [smem:[#allocation0]]
  $region38: #{_pallas_linear.1} parent=0
    _
  %s6 = ssub.s32 1, %s4
  %s7 = scalar_select 0, %s6, %s4
  $region1: #{_pallas_linear.1} parent=0
    #allocation2 [shape = 'u8[32768]{0}', space=vmem, size = 0x8000, scoped, tag = 'input window, operand 1, single buffered']
    #allocation3 [shape = 's32[1]{0}', space=sflag, size = 0x4, scoped, tag = 'scoped memory for _pallas_linear.1']
    #allocation4 [shape = 's32[1]{0}', space=sflag, size = 0x4, scoped, tag = 'scoped memory for _pallas_linear.1']
    #allocation5 [shape = 'u8[8192]{0}', space=vmem, size = 0x2000, scoped, tag = 'output window, operand 0, single buffered']
    %8 = vsyncpa [#allocation3], 0
    %9 = vsyncpa [#allocation4], 0
    // Predicated region
    $region2: #{_pallas_linear.1} parent=1 // pred_check
      _
    $region3: #{_pallas_linear.1} parent=1 // pred_check_branch
      %11 = sbr.rel (0) target = $region5
    $region4: #{_pallas_linear.1} parent=1 // pred_region
      _
    $region5: #{_pallas_linear.1} parent=1 // pred_fallthru
      _
    // Predicated region
    $region6: #{_pallas_linear.1} parent=1 // pred_check
      _
    $region7: #{_pallas_linear.1} parent=1 // pred_check_branch
      %13 = sbr.rel (0) target = $region9
    $region8: #{_pallas_linear.1} parent=1 // pred_region
      %s15 = ssub.s32 1024, 1024
      %16 = vsyncadd [#allocation3], %s15
      %s17 = sshll.u32 [#allocation2], 4
      %s18 = int_to_ptr.vmem [resolvable:$true] %s17
      %23 = dma.hbm_to_vmem [thread:$0]  %s1, 1024, %s18, [#allocation3], 64, 64, 4
    $region9: #{_pallas_linear.1} parent=1 // pred_fallthru
      _
    // Predicated region
    $region10: #{_pallas_linear.1} parent=1 // pred_check
      _
    $region11: #{_pallas_linear.1} parent=1 // pred_check_branch
      %25 = sbr.rel (0) target = $region13
    $region12: #{_pallas_linear.1} parent=1 // pred_region
      _
    $region13: #{_pallas_linear.1} parent=1 // pred_fallthru
      _
    // Predicated region
    $region14: #{_pallas_linear.1} parent=1 // pred_check
      _
    $region15: #{_pallas_linear.1} parent=1 // pred_check_branch
      %27 = sbr.rel (0) target = $region17
    $region16: #{_pallas_linear.1} parent=1 // pred_region
      %28 = dma.done [#allocation3], 1024
    $region17: #{_pallas_linear.1} parent=1 // pred_fallthru
      _
    %v30 = vld [vmem:[%s0] sm:$0xf]
    %v31 = vld [vmem:[%s0 + $0x4] sm:$0xf]
    %v32 = vld [vmem:[#allocation2] sm:$0xf]
    %v33 = vld [vmem:[#allocation2 + $0x4] sm:$0xf]
    %v34 = vld [vmem:[#allocation2 + $0x8] sm:$0xf]
    %v35 = vld [vmem:[#allocation2 + $0xc] sm:$0xf]
    %v36 = vld [vmem:[#allocation2 + $0x10] sm:$0xf]
    %v37 = vld [vmem:[#allocation2 + $0x14] sm:$0xf]
    %v38 = vld [vmem:[#allocation2 + $0x18] sm:$0xf]
    %v39 = vld [vmem:[#allocation2 + $0x1c] sm:$0xf]
    %v40 = vld [vmem:[#allocation2 + $0x20] sm:$0xf]
    %v41 = vld [vmem:[#allocation2 + $0x24] sm:$0xf]
    %v42 = vld [vmem:[#allocation2 + $0x28] sm:$0xf]
    %v43 = vld [vmem:[#allocation2 + $0x2c] sm:$0xf]
    %v44 = vld [vmem:[#allocation2 + $0x30] sm:$0xf]
    %v45 = vld [vmem:[#allocation2 + $0x34] sm:$0xf]
    %v46 = vld [vmem:[#allocation2 + $0x38] sm:$0xf]
    %v47 = vld [vmem:[#allocation2 + $0x3c] sm:$0xf]
    %v50 = vunpack.c.l.b16 %v30
    %v51 = vunpack.c.l.b16 %v31
    %v52 = vpack.c.b16 %v51, %v50
    %v70 = vunpack.c.l.b16 %v32
    %v71 = vunpack.c.l.b16 %v33
    %v72 = vunpack.c.l.b16 %v34
    %v73 = vunpack.c.l.b16 %v35
    %v74 = vunpack.c.l.b16 %v36
    %v75 = vunpack.c.l.b16 %v37
    %v76 = vunpack.c.l.b16 %v38
    %v77 = vunpack.c.l.b16 %v39
    %v78 = vunpack.c.l.b16 %v40
    %v79 = vunpack.c.l.b16 %v41
    %v80 = vunpack.c.l.b16 %v42
    %v81 = vunpack.c.l.b16 %v43
    %v82 = vunpack.c.l.b16 %v44
    %v83 = vunpack.c.l.b16 %v45
    %v84 = vunpack.c.l.b16 %v46
    %v85 = vunpack.c.l.b16 %v47
    %v86 = vpack.c.b16 %v71, %v70
    %v87 = vpack.c.b16 %v73, %v72
    %v88 = vpack.c.b16 %v75, %v74
    %v89 = vpack.c.b16 %v77, %v76
    %v90 = vpack.c.b16 %v79, %v78
    %v91 = vpack.c.b16 %v81, %v80
    %v92 = vpack.c.b16 %v83, %v82
    %v93 = vpack.c.b16 %v85, %v84
    %102 = vmatprep.subr.bf16.mxu0 0
    %103 = vmatpush1.bf16.msra.mxu0 %v93
    %104 = vmatprep.subr.bf16.mxu0 0
    %105 = vmatpush1.bf16.msra.mxu0 %v92
    %106 = vmatprep.subr.bf16.mxu0 0
    %107 = vmatpush1.bf16.msra.mxu0 %v91
    %108 = vmatprep.subr.bf16.mxu0 0
    %109 = vmatpush1.bf16.msra.mxu0 %v90
    %110 = vmatprep.subr.bf16.mxu0 0
    %111 = vmatpush1.bf16.msra.mxu0 %v89
    %112 = vmatprep.subr.bf16.mxu0 0
    %113 = vmatpush1.bf16.msra.mxu0 %v88
    %114 = vmatprep.subr.bf16.mxu0 0
    %115 = vmatpush1.bf16.msra.mxu0 %v87
    %116 = vmatprep.subr.bf16.mxu0 0
    %117 = vmatpush1.bf16.msra.mxu0 %v86
    %118 = vmatprep.subr.bf16.mxu0 0
    %119 = vmatpush2.bf16.msra.mxu0 0
    %120 = vmatprep.subr.bf16.mxu0 0
    %121 = vmatpush2.bf16.msra.mxu0 0
    %122 = vmatprep.subr.bf16.mxu0 0
    %123 = vmatpush2.bf16.msra.mxu0 0
    %124 = vmatprep.subr.bf16.mxu0 0
    %125 = vmatpush2.bf16.msra.mxu0 0
    %126 = vmatprep.subr.bf16.mxu0 0
    %127 = vmatpush2.bf16.msra.mxu0 0
    %128 = vmatprep.subr.bf16.mxu0 0
    %129 = vmatpush2.bf16.msra.mxu0 0
    %130 = vmatprep.subr.bf16.mxu0 0
    %131 = vmatpush2.bf16.msra.mxu0 0
    %132 = vmatprep.subr.bf16.mxu0 0
    %133 = vmatpush2.bf16.msra.mxu0 0
    %134 = vmatprep.mubr.bf16.mxu0 0
    %135 = vmatmul.mubr.bf16.gmra.mxu0 %v52
    %v136 = vpop.f32.mrf.mxu0
    %v137 = vadd.f32 0.0, %v136
    %v138 = vpop.f32.mrf.mxu0
    %v139 = vpop.f32.mrf.mxu0
    %v140 = vadd.f32 0.0, %v139
    %v141 = vpop.f32.mrf.mxu0
    %142 = vdwg.mxu0
    %p143 = scmp.eq.s32.totalorder 0, 0
    // Predicated region
    $region18: #{_pallas_linear.1} parent=1 // pred_check
      %p144 = pneg %p143
    $region19: #{_pallas_linear.1} parent=1 // pred_check_branch
      %146 = sbr.rel (%p144) target = $region21
    $region20: #{_pallas_linear.1} parent=1 // pred_region
      %147 = vst [vmem:[#allocation5] sm:$0xff] %v137
      %148 = vst [vmem:[#allocation5 + $0x8] sm:$0xff] %v140
    $region21: #{_pallas_linear.1} parent=1 // pred_fallthru
      _
    %p149 = scmp.gt.s32.totalorder 0, 0
    // Predicated region
    $region22: #{_pallas_linear.1} parent=1 // pred_check
      %p150 = pneg %p149
    $region23: #{_pallas_linear.1} parent=1 // pred_check_branch
      %152 = sbr.rel (%p150) target = $region25
    $region24: #{_pallas_linear.1} parent=1 // pred_region
      %v153 = vld [vmem:[#allocation5] sm:$0xff]
      %v154 = vld [vmem:[#allocation5 + $0x8] sm:$0xff]
      %v155 = vadd.f32 %v153, %v137
      %v156 = vadd.f32 %v154, %v140
      %157 = vst [vmem:[#allocation5] sm:$0xff] %v155
      %158 = vst [vmem:[#allocation5 + $0x8] sm:$0xff] %v156
    $region25: #{_pallas_linear.1} parent=1 // pred_fallthru
      _
    // Predicated region
    $region26: #{_pallas_linear.1} parent=1 // pred_check
      %p159 = pneg %p143
    $region27: #{_pallas_linear.1} parent=1 // pred_check_branch
      %161 = sbr.rel (%p159) target = $region29
    $region28: #{_pallas_linear.1} parent=1 // pred_region
      %v162 = vld [vmem:[#allocation5] sm:$0xff]
      %v163 = vld [vmem:[#allocation5 + $0x8] sm:$0xff]
      %v164 = vld [vmem:[%s2] sm:$0x1]
      %v166 = vlaneseq
      %v167 = vshrl.u32 %v166, 7
      %v168 = vsub.s32 0, %v167
      %v169 = vrot.slane %v164, %v168
      %v171 = vadd.f32 %v162, %v169
      %v172 = vadd.f32 %v163, %v169
      %173 = vst [vmem:[#allocation5] sm:$0xff] %v171
      %174 = vst [vmem:[#allocation5 + $0x8] sm:$0xff] %v172
    $region29: #{_pallas_linear.1} parent=1 // pred_fallthru
      _
    // Predicated region
    $region30: #{_pallas_linear.1} parent=1 // pred_check
      _
    $region31: #{_pallas_linear.1} parent=1 // pred_check_branch
      %176 = sbr.rel (0) target = $region33
    $region32: #{_pallas_linear.1} parent=1 // pred_region
      %s178 = ssub.s32 256, 256
      %179 = vsyncadd [#allocation4], %s178
      %s180 = sshll.u32 [#allocation5], 4
      %s181 = int_to_ptr.vmem [resolvable:$true] %s180
      %186 = dma.vmem_to_hbm [thread:$0]  %s181, 256, %s3, [#allocation4], 128, 128, 8
    $region33: #{_pallas_linear.1} parent=1 // pred_fallthru
      _
    // Predicated region
    $region34: #{_pallas_linear.1} parent=1 // pred_check
      _
    $region35: #{_pallas_linear.1} parent=1 // pred_check_branch
      %188 = sbr.rel (0) target = $region37
    $region36: #{_pallas_linear.1} parent=1 // pred_region
      %189 = dma.done [#allocation4], 256
    $region37: #{_pallas_linear.1} parent=1 // pred_fallthru
      _
    %190 = vsyncpa [#allocation3], 1
    %191 = vsyncpa [#allocation4], 1

</llo_original>
